<compile_context>
chip_gen: v7x
topology: tpu7x:2x2x1
jax: 0.10.0
libtpu: 0.0.40
codegen_flags: <defaults>
</compile_context>

<pallas_src>
import functools

import jax
import jax.numpy as jnp
from jax.experimental import pallas as pl
from jax.experimental.pallas import tpu as pltpu

LATENT_DIM = 32
H1 = 512
H2 = 256
OUT = 1

# Below this many rows per core, splitting the batch into >=2 grid steps (for
# v7x megacore) costs more in fixed per-step overhead than it gains.
_MIN_ROWS_FOR_SPLIT = 128


def _round_up(x, m):
    return (x + m - 1) // m * m


def _discriminator_kernel(z_ref, w1_ref, b1_ref, w2_ref, b2_ref, w3_ref, b3_ref,
                          out_ref):
    """Forward for one (tb, latent) batch tile; weights resident in VMEM."""
    tb = out_ref.shape[-1]

    # Linear 1 (bf16 MXU inputs, f32 accumulate) + LeakyReLU(0.2) in f32.
    # K=32 under-fills the MXU contraction dim, but layer 2 dominates MXU time;
    # padding K or pre-casting z in the wrapper would only add HBM traffic.
    z = z_ref[...].astype(jnp.bfloat16)
    h1 = jnp.dot(z, w1_ref[...], preferred_element_type=jnp.float32) + b1_ref[...]
    h1 = jnp.maximum(h1, 0.2 * h1)          # LeakyReLU(0.2): mul+max, no cmp/select

    # Linear 2 (bf16 MXU inputs, f32 accumulate) + LeakyReLU(0.2) in f32.
    h2 = jnp.dot(h1.astype(jnp.bfloat16), w2_ref[...],
                 preferred_element_type=jnp.float32) + b2_ref[...]
    h2 = jnp.maximum(h2, 0.2 * h2)

    # Linear 3: (tb,256)@(256,1) would waste full MXU passes for one output
    # column -> do it on the VPU as multiply + lane reduction vs a (1,256) row.
    logits = jnp.sum(h2 * w3_ref[...], axis=-1, keepdims=True) + b3_ref[...]  # (tb, 1)

    # Sigmoid: exp and the approximate reciprocal both ride the EUP slot.
    sig = pl.reciprocal(1.0 + jnp.exp(-logits), approx=True)                  # (tb, 1)

    # Lane-dense store: relayout (tb,1) -> (1,tb) (XLU, otherwise idle here) so
    # the output block is a tb-wide row instead of 1 lane per sublane.
    out_ref[...] = jnp.transpose(sig).reshape(1, 1, tb)


@functools.partial(jax.jit, static_argnames=("block_batch",))
def discriminator_forward(z, w1, b1, w2, b2, w3, b3, *, block_batch=2048):
    batch = z.shape[0]

    # Padding-aware tile choice: number of tiles from the cap, then the smallest
    # tile (multiple of 8 f32 sublanes) covering the batch -> minimal pad waste.
    n_tiles = pl.cdiv(batch, block_batch)
    if batch >= 2 * _MIN_ROWS_FOR_SPLIT:
        # v7x has 2 TensorCores: ensure the "parallel" batch axis has >=2 steps
        # so both cores get work; harmless serial loop on 1-TC chips.
        n_tiles = max(n_tiles, 2)
    tb = _round_up(pl.cdiv(batch, n_tiles), 8)
    padded = n_tiles * tb
    if padded != batch:
        z = jnp.pad(z, ((0, padded - batch), (0, 0)))

    batch_spec = pl.BlockSpec((tb, LATENT_DIM), lambda i: (i, 0))
    # Lane-dense output: (n_tiles, 1, tb) array with a (1, 1, tb) block per step.
    out_spec = pl.BlockSpec((1, 1, tb), lambda i: (i, 0, 0))
    # Constant index_map -> block index never changes -> weights stay resident.
    resident = lambda shape: pl.BlockSpec(shape, lambda i: tuple(0 for _ in shape))

    flops = 2 * padded * (LATENT_DIM * H1 + H1 * H2 + H2)
    bytes_accessed = (padded * LATENT_DIM * 4 + padded * OUT * 4
                      + w1.size * 2 + w2.size * 2
                      + (b1.size + b2.size + w3.size + b3.size) * 4)

    out = pl.pallas_call(
        _discriminator_kernel,
        out_shape=jax.ShapeDtypeStruct((n_tiles, 1, tb), jnp.float32),
        grid=(n_tiles,),
        in_specs=[
            batch_spec,
            resident(w1.shape), resident(b1.shape),
            resident(w2.shape), resident(b2.shape),
            resident(w3.shape), resident(b3.shape),
        ],
        out_specs=out_spec,
        compiler_params=pltpu.CompilerParams(
            dimension_semantics=("parallel",),
            # tb up to 2048 peaks around 10-14 MiB of VMEM; raise the scoped
            # limit past v5e's 16 MiB default (well under 64 MiB v7x physical).
            vmem_limit_bytes=48 * 1024 * 1024),
        cost_estimate=pl.CostEstimate(
            flops=flops, transcendentals=2 * padded,
            bytes_accessed=bytes_accessed),
    )(z, w1, b1, w2, b2, w3, b3)
    return out.reshape(padded, OUT)[:batch]


def init_params(key):
    """PyTorch-style nn.Linear default init: U(-1/sqrt(fan_in), 1/sqrt(fan_in)).

    w1/w2 are stored in bf16 (MXU-native, halves weight DMA/VMEM); w3 is kept
    as an f32 (1, 256) row for the VPU reduction; biases are f32 (1, out) rows.
    """
    ks = jax.random.split(key, 6)

    def linear(kw, kb, fan_in, fan_out, w_dtype):
        bound = 1.0 / jnp.sqrt(float(fan_in))
        w = jax.random.uniform(kw, (fan_in, fan_out), jnp.float32, -bound, bound)
        b = jax.random.uniform(kb, (1, fan_out), jnp.float32, -bound, bound)
        return w.astype(w_dtype), b

    w1, b1 = linear(ks[0], ks[1], LATENT_DIM, H1, jnp.bfloat16)
    w2, b2 = linear(ks[2], ks[3], H1, H2, jnp.bfloat16)
    w3_col, b3 = linear(ks[4], ks[5], H2, OUT, jnp.float32)
    w3 = w3_col.reshape(1, H2)          # (256, 1) -> (1, 256) row
    return w1, b1, w2, b2, w3, b3


def _reference_forward(z, w1, b1, w2, b2, w3, b3):
    """Pure-JAX reference with the same bf16-input / f32-accumulate precision.

    Only difference vs the kernel: exact reciprocal in the sigmoid (the kernel
    uses the EUP approximate reciprocal), covered by the test tolerance.
    """
    h1 = jnp.dot(z.astype(jnp.bfloat16), w1,
                 preferred_element_type=jnp.float32) + b1
    h1 = jnp.maximum(h1, 0.2 * h1)
    h2 = jnp.dot(h1.astype(jnp.bfloat16), w2,
                 preferred_element_type=jnp.float32) + b2
    h2 = jnp.maximum(h2, 0.2 * h2)
    logits = jnp.sum(h2 * w3, axis=-1, keepdims=True) + b3
    return 1.0 / (1.0 + jnp.exp(-logits))


if __name__ == "__main__":
    key = jax.random.PRNGKey(0)
    k_params, k_small, k_big = jax.random.split(key, 3)
    params = init_params(k_params)

    # Small case (toy batch, single tile, tb=8).
    z_small = jax.random.normal(k_small, (8, LATENT_DIM), jnp.float32)
    out_small = jax.block_until_ready(discriminator_forward(z_small, *params))
    ref_small = _reference_forward(z_small, *params)
    assert out_small.shape == (8, OUT)
    assert jnp.allclose(out_small, ref_small, atol=2e-3, rtol=2e-3)

    # Ragged batch: exercises padding-aware tiling (2 tiles of 152 rows ->
    # padded=304), the megacore split, and the lane-dense output path.
    z_big = jax.random.normal(k_big, (300, LATENT_DIM), jnp.float32)
    out_big = jax.block_until_ready(discriminator_forward(z_big, *params))
    ref_big = _reference_forward(z_big, *params)
    assert out_big.shape == (300, OUT)
    assert jnp.allclose(out_big, ref_big, atol=2e-3, rtol=2e-3)

    print("KERNEL_OK")
</pallas_src>

<mosaic_0001>
module attributes {stable_mosaic.version = 11 : i64} {
  func.func @_discriminator_kernel(%arg0: i32, %arg1: memref<8x32xf32, #tpu.memory_space<vmem>>, %arg2: memref<32x512xbf16, #tpu.memory_space<vmem>>, %arg3: memref<1x512xf32, #tpu.memory_space<vmem>>, %arg4: memref<512x256xbf16, #tpu.memory_space<vmem>>, %arg5: memref<1x256xf32, #tpu.memory_space<vmem>>, %arg6: memref<1x256xf32, #tpu.memory_space<vmem>>, %arg7: memref<1x1xf32, #tpu.memory_space<vmem>>, %arg8: memref<1x1x8xf32, #tpu.memory_space<vmem>>) attributes {dimension_semantics = [#tpu.dimension_semantics<parallel>], iteration_bounds = array<i64: 1>, scalar_prefetch = 0 : i64, scratch_operands = 0 : i64, tpu.core_type = #tpu.core_type<tc>, window_params = [{transform_indices = @transform_0, window_bounds = array<i64: 8, 32>}, {pipeline_mode = #tpu.pipeline_mode<synchronous>, transform_indices = @transform_1, window_bounds = array<i64: 32, 512>}, {pipeline_mode = #tpu.pipeline_mode<synchronous>, transform_indices = @transform_2, window_bounds = array<i64: 1, 512>}, {pipeline_mode = #tpu.pipeline_mode<synchronous>, transform_indices = @transform_3, window_bounds = array<i64: 512, 256>}, {pipeline_mode = #tpu.pipeline_mode<synchronous>, transform_indices = @transform_4, window_bounds = array<i64: 1, 256>}, {pipeline_mode = #tpu.pipeline_mode<synchronous>, transform_indices = @transform_5, window_bounds = array<i64: 1, 256>}, {pipeline_mode = #tpu.pipeline_mode<synchronous>, transform_indices = @transform_6, window_bounds = array<i64: 1, 1>}, {transform_indices = @transform_7, window_bounds = array<i64: 1, 1, 8>}]} {
    %c0 = arith.constant 0 : index
    %c0_0 = arith.constant 0 : index
    %0 = vector.load %arg1[%c0, %c0_0] : memref<8x32xf32, #tpu.memory_space<vmem>>, vector<8x32xf32>
    %1 = arith.truncf %0 : vector<8x32xf32> to vector<8x32xbf16>
    %c0_1 = arith.constant 0 : index
    %c0_2 = arith.constant 0 : index
    %2 = vector.load %arg2[%c0_1, %c0_2] : memref<32x512xbf16, #tpu.memory_space<vmem>>, vector<32x512xbf16>
    %cst = arith.constant dense<0.000000e+00> : vector<8x512xf32>
    %3 = tpu.matmul %1, %2, %cst {dimension_numbers = #tpu.dot_dimension_numbers<[1], [0], [0], [1], [0, 0, 1, 1], [], []>} : vector<8x32xbf16>, vector<32x512xbf16>, vector<8x512xf32> -> vector<8x512xf32>
    %c0_3 = arith.constant 0 : index
    %c0_4 = arith.constant 0 : index
    %4 = vector.load %arg3[%c0_3, %c0_4] : memref<1x512xf32, #tpu.memory_space<vmem>>, vector<1x512xf32>
    %5 = vector.broadcast %4 : vector<1x512xf32> to vector<8x512xf32>
    %6 = arith.addf %3, %5 : vector<8x512xf32>
    %cst_5 = arith.constant 2.000000e-01 : f32
    %7 = vector.broadcast %cst_5 : f32 to vector<8x512xf32>
    %8 = arith.mulf %7, %6 : vector<8x512xf32>
    %9 = arith.maximumf %6, %8 : vector<8x512xf32>
    %10 = arith.truncf %9 : vector<8x512xf32> to vector<8x512xbf16>
    %c0_6 = arith.constant 0 : index
    %c0_7 = arith.constant 0 : index
    %11 = vector.load %arg4[%c0_6, %c0_7] : memref<512x256xbf16, #tpu.memory_space<vmem>>, vector<512x256xbf16>
    %cst_8 = arith.constant dense<0.000000e+00> : vector<8x256xf32>
    %12 = tpu.matmul %10, %11, %cst_8 {dimension_numbers = #tpu.dot_dimension_numbers<[1], [0], [0], [1], [0, 0, 1, 1], [], []>} : vector<8x512xbf16>, vector<512x256xbf16>, vector<8x256xf32> -> vector<8x256xf32>
    %c0_9 = arith.constant 0 : index
    %c0_10 = arith.constant 0 : index
    %13 = vector.load %arg5[%c0_9, %c0_10] : memref<1x256xf32, #tpu.memory_space<vmem>>, vector<1x256xf32>
    %14 = vector.broadcast %13 : vector<1x256xf32> to vector<8x256xf32>
    %15 = arith.addf %12, %14 : vector<8x256xf32>
    %cst_11 = arith.constant 2.000000e-01 : f32
    %16 = vector.broadcast %cst_11 : f32 to vector<8x256xf32>
    %17 = arith.mulf %16, %15 : vector<8x256xf32>
    %18 = arith.maximumf %15, %17 : vector<8x256xf32>
    %c0_12 = arith.constant 0 : index
    %c0_13 = arith.constant 0 : index
    %19 = vector.load %arg6[%c0_12, %c0_13] : memref<1x256xf32, #tpu.memory_space<vmem>>, vector<1x256xf32>
    %20 = vector.broadcast %19 : vector<1x256xf32> to vector<8x256xf32>
    %21 = arith.mulf %18, %20 : vector<8x256xf32>
    %cst_14 = arith.constant dense<0.000000e+00> : vector<8xf32>
    %22 = vector.multi_reduction <add>, %21, %cst_14 [1] : vector<8x256xf32> to vector<8xf32>
    %23 = vector.shape_cast %22 : vector<8xf32> to vector<8x1xf32>
    %c0_15 = arith.constant 0 : index
    %c0_16 = arith.constant 0 : index
    %24 = vector.load %arg7[%c0_15, %c0_16] : memref<1x1xf32, #tpu.memory_space<vmem>>, vector<1x1xf32>
    %25 = vector.broadcast %24 : vector<1x1xf32> to vector<8x1xf32>
    %26 = arith.addf %23, %25 : vector<8x1xf32>
    %cst_17 = arith.constant 0.000000e+00 : f32
    %27 = vector.broadcast %cst_17 : f32 to vector<8x1xf32>
    %28 = arith.subf %27, %26 : vector<8x1xf32>
    %29 = math.exp %28 : vector<8x1xf32>
    %cst_18 = arith.constant 1.000000e+00 : f32
    %30 = vector.broadcast %cst_18 : f32 to vector<8x1xf32>
    %31 = arith.addf %30, %29 : vector<8x1xf32>
    %32 = tpu.reciprocal %31 {approx = true} : vector<8x1xf32> -> vector<8x1xf32>
    %33 = tpu.transpose %32, [1, 0] : vector<8x1xf32> -> vector<1x8xf32>
    %34 = vector.shape_cast %33 : vector<1x8xf32> to vector<1x1x8xf32>
    %c0_19 = arith.constant 0 : index
    %c0_20 = arith.constant 0 : index
    %c0_21 = arith.constant 0 : index
    %35 = vector.load %arg8[%c0_19, %c0_20, %c0_21] : memref<1x1x8xf32, #tpu.memory_space<vmem>>, vector<1x1x8xf32>
    tpu.vector_store %arg8[%c0_19, %c0_20, %c0_21], %34 {strides = array<i32>} : memref<1x1x8xf32, #tpu.memory_space<vmem>>, vector<1x1x8xf32>,
    return
  }
  func.func @transform_0(%arg0: i32) -> (i32, i32) {
    %c0_i32 = arith.constant 0 : i32
    %c0_i32_0 = arith.constant 0 : i32
    return %arg0, %c0_i32 : i32, i32
  }
  func.func @transform_1(%arg0: i32) -> (i32, i32) {
    %c0_i32 = arith.constant 0 : i32
    %c0_i32_0 = arith.constant 0 : i32
    %c0_i32_1 = arith.constant 0 : i32
    return %c0_i32, %c0_i32_0 : i32, i32
  }
  func.func @transform_2(%arg0: i32) -> (i32, i32) {
    %c0_i32 = arith.constant 0 : i32
    %c0_i32_0 = arith.constant 0 : i32
    %c0_i32_1 = arith.constant 0 : i32
    return %c0_i32, %c0_i32_0 : i32, i32
  }
  func.func @transform_3(%arg0: i32) -> (i32, i32) {
    %c0_i32 = arith.constant 0 : i32
    %c0_i32_0 = arith.constant 0 : i32
    %c0_i32_1 = arith.constant 0 : i32
    return %c0_i32, %c0_i32_0 : i32, i32
  }
  func.func @transform_4(%arg0: i32) -> (i32, i32) {
    %c0_i32 = arith.constant 0 : i32
    %c0_i32_0 = arith.constant 0 : i32
    %c0_i32_1 = arith.constant 0 : i32
    return %c0_i32, %c0_i32_0 : i32, i32
  }
  func.func @transform_5(%arg0: i32) -> (i32, i32) {
    %c0_i32 = arith.constant 0 : i32
    %c0_i32_0 = arith.constant 0 : i32
    %c0_i32_1 = arith.constant 0 : i32
    return %c0_i32, %c0_i32_0 : i32, i32
  }
  func.func @transform_6(%arg0: i32) -> (i32, i32) {
    %c0_i32 = arith.constant 0 : i32
    %c0_i32_0 = arith.constant 0 : i32
    %c0_i32_1 = arith.constant 0 : i32
    return %c0_i32, %c0_i32_0 : i32, i32
  }
  func.func @transform_7(%arg0: i32) -> (i32, i32, i32) {
    %c0_i32 = arith.constant 0 : i32
    %c0_i32_0 = arith.constant 0 : i32
    %c0_i32_1 = arith.constant 0 : i32
    return %arg0, %c0_i32, %c0_i32_0 : i32, i32, i32
  }
}

</mosaic_0001>

<llo_original>
// kernel: discriminator_forward.1
$region0: #{discriminator_forward.1}
  #allocation0 [shape = 'u32[]', space=smem, size = 0x4, offset = 0x4, fixed_abs, tag = 'smem constant byte address 0x4 - core index']
  #allocation1 [shape = 'u32[144,128]{1,0:T(1,128)}', space=vmem, size = 0x12000, scoped, tag = 'internal scratch']
  #allocation2 [shape = 'f32[1,1]{1,0:T(1,128)S(1)}', space=vmem, size = 0x200, scoped, tag = 'scoped memory for discriminator_forward.1']
  %s0 = inlined_call_operand.hbm [shape: f32[8,32], index: 0, kind: input, shape index: {}]
  %s1 = inlined_call_operand.hbm [shape: bf16[32,512], index: 1, kind: input, shape index: {}]
  %s2 = inlined_call_operand.vmem [shape: f32[1,512], index: 2, kind: input, shape index: {}]
  %s3 = inlined_call_operand.hbm [shape: bf16[512,256], index: 3, kind: input, shape index: {}]
  %s4 = inlined_call_operand.vmem [shape: f32[1,256], index: 4, kind: input, shape index: {}]
  %s5 = inlined_call_operand.vmem [shape: f32[1,256], index: 5, kind: input, shape index: {}]
  %s6 = inlined_call_operand.<no memory space> [shape: f32[1,1], index: 6, kind: input, shape index: {}]
  %s7 = inlined_call_operand.hbm [shape: f32[1,1,8], index: 7, kind: output, shape index: {}]
  %s8 = sld [smem:[#allocation0]]
  $region50: #{discriminator_forward.1} parent=0
    _
  %s10 = ssub.s32 1, %s8
  %s11 = scalar_select 0, %s10, %s8
  %v12 = vstv %s6
  %13 = vst [vmem:[#allocation2] sm:$0x1] %v12
  $region1: #{discriminator_forward.1} parent=0
    #allocation3 [shape = 'u8[4096]{0}', space=vmem, size = 0x1000, scoped, tag = 'input window, operand 0, single buffered']
    #allocation4 [shape = 's32[1]{0}', space=sflag, size = 0x4, scoped, tag = 'scoped memory for discriminator_forward.1']
    #allocation5 [shape = 's32[1]{0}', space=sflag, size = 0x4, scoped, tag = 'scoped memory for discriminator_forward.1']
    #allocation6 [shape = 'u8[32768]{0}', space=vmem, size = 0x8000, scoped, tag = 'input window, operand 1, single buffered']
    #allocation7 [shape = 's32[1]{0}', space=sflag, size = 0x4, scoped, tag = 'scoped memory for discriminator_forward.1']
    #allocation8 [shape = 'u8[262144]{0}', space=vmem, size = 0x40000, scoped, tag = 'input window, operand 3, single buffered']
    #allocation9 [shape = 'u8[512]{0}', space=vmem, size = 0x400, scoped, tag = 'output window, operand 0, single buffered']
    %14 = vsyncpa [#allocation4], 0
    %15 = vsyncpa [#allocation7], 0
    %16 = vsyncpa [#allocation5], 0
    // Predicated region
    $region2: #{discriminator_forward.1} parent=1 // pred_check
      _
    $region3: #{discriminator_forward.1} parent=1 // pred_check_branch
      %18 = sbr.rel (0) target = $region5
    $region4: #{discriminator_forward.1} parent=1 // pred_region
      %s20 = ssub.s32 128, 128
      %21 = vsyncadd [#allocation4], %s20
      %s23 = sshll.u32 [#allocation3], 4
      %s24 = int_to_ptr.vmem [resolvable:$true] %s23
      %26 = dma.hbm_to_vmem [thread:$0]  %s0, 128, %s24, [#allocation4]
    $region5: #{discriminator_forward.1} parent=1 // pred_fallthru
      _
    // Predicated region
    $region6: #{discriminator_forward.1} parent=1 // pred_check
      _
    $region7: #{discriminator_forward.1} parent=1 // pred_check_branch
      %28 = sbr.rel (0) target = $region9
    $region8: #{discriminator_forward.1} parent=1 // pred_region
      %s30 = ssub.s32 1024, 1024
      %31 = vsyncadd [#allocation7], %s30
      %s32 = sshll.u32 [#allocation6], 4
      %s33 = int_to_ptr.vmem [resolvable:$true] %s32
      %38 = dma.hbm_to_vmem [thread:$0]  %s1, 1024, %s33, [#allocation7], 256, 256, 16
    $region9: #{discriminator_forward.1} parent=1 // pred_fallthru
      _
    // Predicated region
    $region10: #{discriminator_forward.1} parent=1 // pred_check
      _
    $region11: #{discriminator_forward.1} parent=1 // pred_check_branch
      %40 = sbr.rel (0) target = $region13
    $region12: #{discriminator_forward.1} parent=1 // pred_region
      _
    $region13: #{discriminator_forward.1} parent=1 // pred_fallthru
      _
    // Predicated region
    $region14: #{discriminator_forward.1} parent=1 // pred_check
      _
    $region15: #{discriminator_forward.1} parent=1 // pred_check_branch
      %42 = sbr.rel (0) target = $region17
    $region16: #{discriminator_forward.1} parent=1 // pred_region
      %s44 = ssub.s32 8192, 8192
      %45 = vsyncadd [#allocation7], %s44
      %s46 = sshll.u32 [#allocation8], 4
      %s47 = int_to_ptr.vmem [resolvable:$true] %s46
      %52 = dma.hbm_to_vmem [thread:$0]  %s3, 8192, %s47, [#allocation7], 128, 128, 8
    $region17: #{discriminator_forward.1} parent=1 // pred_fallthru
      _
    // Predicated region
    $region18: #{discriminator_forward.1} parent=1 // pred_check
      _
    $region19: #{discriminator_forward.1} parent=1 // pred_check_branch
      %54 = sbr.rel (0) target = $region21
    $region20: #{discriminator_forward.1} parent=1 // pred_region
      _
    $region21: #{discriminator_forward.1} parent=1 // pred_fallthru
      _
    // Predicated region
    $region22: #{discriminator_forward.1} parent=1 // pred_check
      _
    $region23: #{discriminator_forward.1} parent=1 // pred_check_branch
      %56 = sbr.rel (0) target = $region25
    $region24: #{discriminator_forward.1} parent=1 // pred_region
      _
    $region25: #{discriminator_forward.1} parent=1 // pred_fallthru
      _
    // Predicated region
    $region26: #{discriminator_forward.1} parent=1 // pred_check
      _
    $region27: #{discriminator_forward.1} parent=1 // pred_check_branch
      %58 = sbr.rel (0) target = $region29
    $region28: #{discriminator_forward.1} parent=1 // pred_region
      _
    $region29: #{discriminator_forward.1} parent=1 // pred_fallthru
      _
    // Predicated region
    $region30: #{discriminator_forward.1} parent=1 // pred_check
      _
    $region31: #{discriminator_forward.1} parent=1 // pred_check_branch
      %60 = sbr.rel (0) target = $region33
    $region32: #{discriminator_forward.1} parent=1 // pred_region
      %61 = dma.done [#allocation4], 128
    $region33: #{discriminator_forward.1} parent=1 // pred_fallthru
      _
    // Predicated region
    $region34: #{discriminator_forward.1} parent=1 // pred_check
      _
    $region35: #{discriminator_forward.1} parent=1 // pred_check_branch
      %63 = sbr.rel (0) target = $region37
    $region36: #{discriminator_forward.1} parent=1 // pred_region
      %64 = dma.done [#allocation7], 1024
    $region37: #{discriminator_forward.1} parent=1 // pred_fallthru
      _
    // Predicated region
    $region38: #{discriminator_forward.1} parent=1 // pred_check
      _
    $region39: #{discriminator_forward.1} parent=1 // pred_check_branch
      %66 = sbr.rel (0) target = $region41
    $region40: #{discriminator_forward.1} parent=1 // pred_region
      %67 = dma.done [#allocation7], 8192
    $region41: #{discriminator_forward.1} parent=1 // pred_fallthru
      _
    %v69 = vld [vmem:[#allocation3] sm:$0xff]
    %v70 = vpack.c.bf16 %v69, %v69
    %v71 = vld [vmem:[#allocation6] sm:$0xff]
    %v72 = vld [vmem:[#allocation6 + $0x8] sm:$0xff]
    %v73 = vld [vmem:[#allocation6 + $0x10] sm:$0xff]
    %v74 = vld [vmem:[#allocation6 + $0x18] sm:$0xff]
    %v75 = vld [vmem:[#allocation6 + $0x20] sm:$0xff]
    %v76 = vld [vmem:[#allocation6 + $0x28] sm:$0xff]
    %v77 = vld [vmem:[#allocation6 + $0x30] sm:$0xff]
    %v78 = vld [vmem:[#allocation6 + $0x38] sm:$0xff]
    %v79 = vld [vmem:[%s2] sm:$0xf]
    %v81 = vlaneseq
    %v82 = vshrl.u32 %v81, 7
    %v83 = vsub.s32 0, %v82
    %v84 = vrot.slane %v79, %v83
    %v85 = vlaneseq
    %v86 = vshrl.u32 %v85, 7
    %v87 = vsub.s32 1, %v86
    %v88 = vrot.slane %v79, %v87
    %v89 = vlaneseq
    %v90 = vshrl.u32 %v89, 7
    %v91 = vsub.s32 2, %v90
    %v92 = vrot.slane %v79, %v91
    %v93 = vlaneseq
    %v94 = vshrl.u32 %v93, 7
    %v95 = vsub.s32 3, %v94
    %v96 = vrot.slane %v79, %v95
    %v109 = vunpack.c.l.b16 %v71
    %v110 = vunpack.c.h.b16 %v71
    %v111 = vunpack.c.l.b16 %v72
    %v112 = vunpack.c.h.b16 %v72
    %v113 = vunpack.c.l.b16 %v73
    %v114 = vunpack.c.h.b16 %v73
    %v115 = vunpack.c.l.b16 %v74
    %v116 = vunpack.c.h.b16 %v74
    %v117 = vunpack.c.l.b16 %v75
    %v118 = vunpack.c.h.b16 %v75
    %v119 = vunpack.c.l.b16 %v76
    %v120 = vunpack.c.h.b16 %v76
    %v121 = vunpack.c.l.b16 %v77
    %v122 = vunpack.c.h.b16 %v77
    %v123 = vunpack.c.l.b16 %v78
    %v124 = vunpack.c.h.b16 %v78
    %v125 = vpack.c.b16 %v113, %v109
    %v126 = vpack.c.b16 %v114, %v110
    %v127 = vpack.c.b16 %v115, %v111
    %v128 = vpack.c.b16 %v116, %v112
    %v129 = vpack.c.b16 %v121, %v117
    %v130 = vpack.c.b16 %v122, %v118
    %v131 = vpack.c.b16 %v123, %v119
    %v132 = vpack.c.b16 %v124, %v120
    %vm141 = vcmask 261120
    %v143 = vsel %vm141, %v70, 0
    %145 = vmatprep.subr.bf16.mxu0 %v126
    %146 = vmatpush1.bf16.msra.mxu0 %v125
    %147 = vmatprep.subr.bf16.mxu0 %v130
    %148 = vmatpush1.bf16.msra.mxu0 %v129
    %149 = vmatprep.subr.bf16.mxu0 0
    %150 = vmatpush1.bf16.msra.mxu0 0
    %151 = vmatprep.subr.bf16.mxu0 0
    %152 = vmatpush1.bf16.msra.mxu0 0
    %153 = vmatprep.subr.bf16.mxu0 0
    %154 = vmatpush1.bf16.msra.mxu0 0
    %155 = vmatprep.subr.bf16.mxu0 0
    %156 = vmatpush1.bf16.msra.mxu0 0
    %157 = vmatprep.subr.bf16.mxu0 0
    %158 = vmatpush1.bf16.msra.mxu0 0
    %159 = vmatprep.subr.bf16.mxu0 0
    %160 = vmatpush1.bf16.msra.mxu0 0
    %161 = vmatprep.subr.bf16.mxu0 0
    %162 = vmatpush1.bf16.msra.mxu0 0
    %163 = vmatprep.subr.bf16.mxu0 0
    %164 = vmatpush1.bf16.msra.mxu0 0
    %165 = vmatprep.subr.bf16.mxu0 0
    %166 = vmatpush1.bf16.msra.mxu0 0
    %167 = vmatprep.subr.bf16.mxu0 0
    %168 = vmatpush1.bf16.msra.mxu0 0
    %169 = vmatprep.subr.bf16.mxu0 0
    %170 = vmatpush1.bf16.msra.mxu0 0
    %171 = vmatprep.subr.bf16.mxu0 0
    %172 = vmatpush1.bf16.msra.mxu0 0
    %173 = vmatprep.subr.bf16.mxu0 0
    %174 = vmatpush1.bf16.msra.mxu0 0
    %175 = vmatprep.subr.bf16.mxu0 0
    %176 = vmatpush1.bf16.msra.mxu0 0
    %177 = vmatprep.mubr.bf16.mxu0 0
    %178 = vmatmul.mubr.bf16.gmra.mrb[0].mxu0 %v143
    %v179 = vpop.f32.mrb[0].mxu0
    %v180 = vadd.f32 %v84, %v179
    %v181 = vpop.f32.mrb[0].mxu0
    %v182 = vadd.f32 %v88, %v181
    %v183 = vpop.f32.mrb[0].mxu0
    %v184 = vpop.f32.mrb[0].mxu0
    %185 = vdwg.mxu0
    %186 = vmatprep.subr.bf16.mxu0 %v128
    %187 = vmatpush1.bf16.msra.mxu0 %v127
    %188 = vmatprep.subr.bf16.mxu0 %v132
    %189 = vmatpush1.bf16.msra.mxu0 %v131
    %190 = vmatprep.subr.bf16.mxu0 0
    %191 = vmatpush1.bf16.msra.mxu0 0
    %192 = vmatprep.subr.bf16.mxu0 0
    %193 = vmatpush1.bf16.msra.mxu0 0
    %194 = vmatprep.subr.bf16.mxu0 0
    %195 = vmatpush1.bf16.msra.mxu0 0
    %196 = vmatprep.subr.bf16.mxu0 0
    %197 = vmatpush1.bf16.msra.mxu0 0
    %198 = vmatprep.subr.bf16.mxu0 0
    %199 = vmatpush1.bf16.msra.mxu0 0
    %200 = vmatprep.subr.bf16.mxu0 0
    %201 = vmatpush1.bf16.msra.mxu0 0
    %202 = vmatprep.subr.bf16.mxu0 0
    %203 = vmatpush1.bf16.msra.mxu0 0
    %204 = vmatprep.subr.bf16.mxu0 0
    %205 = vmatpush1.bf16.msra.mxu0 0
    %206 = vmatprep.subr.bf16.mxu0 0
    %207 = vmatpush1.bf16.msra.mxu0 0
    %208 = vmatprep.subr.bf16.mxu0 0
    %209 = vmatpush1.bf16.msra.mxu0 0
    %210 = vmatprep.subr.bf16.mxu0 0
    %211 = vmatpush1.bf16.msra.mxu0 0
    %212 = vmatprep.subr.bf16.mxu0 0
    %213 = vmatpush1.bf16.msra.mxu0 0
    %214 = vmatprep.subr.bf16.mxu0 0
    %215 = vmatpush1.bf16.msra.mxu0 0
    %216 = vmatprep.subr.bf16.mxu0 0
    %217 = vmatpush1.bf16.msra.mxu0 0
    %218 = vmatprep.mubr.bf16.mxu0 0
    %219 = vmatmul.mubr.bf16.gmra.mrb[0].mxu0 %v143
    %v220 = vpop.f32.mrb[0].mxu0
    %v221 = vadd.f32 %v92, %v220
    %v222 = vpop.f32.mrb[0].mxu0
    %v223 = vadd.f32 %v96, %v222
    %v224 = vpop.f32.mrb[0].mxu0
    %v225 = vpop.f32.mrb[0].mxu0
    %226 = vdwg.mxu0
    %v227 = vmul.f32 %v180, 0.2
    %v228 = vmul.f32 %v182, 0.2
    %v229 = vmul.f32 %v221, 0.2
    %v230 = vmul.f32 %v223, 0.2
    %v231 = vmax.f32 %v180, %v227
    %v232 = vmax.f32 %v182, %v228
    %v233 = vmax.f32 %v221, %v229
    %v234 = vmax.f32 %v223, %v230
    %v235 = vpack.c.bf16 %v231, %v231
    %v236 = vpack.c.bf16 %v232, %v232
    %v237 = vpack.c.bf16 %v233, %v233
    %v238 = vpack.c.bf16 %v234, %v234
    %v239 = vld [vmem:[#allocation8] sm:$0xff]
    %v240 = vld [vmem:[#allocation8 + $0x8] sm:$0xff]
    %v241 = vld [vmem:[#allocation8 + $0x10] sm:$0xff]
    %v242 = vld [vmem:[#allocation8 + $0x18] sm:$0xff]
    %v243 = vld [vmem:[#allocation8 + $0x20] sm:$0xff]
    %v244 = vld [vmem:[#allocation8 + $0x28] sm:$0xff]
    %v245 = vld [vmem:[#allocation8 + $0x30] sm:$0xff]
    %v246 = vld [vmem:[#allocation8 + $0x38] sm:$0xff]
    %v247 = vld [vmem:[#allocation8 + $0x40] sm:$0xff]
    %v248 = vld [vmem:[#allocation8 + $0x48] sm:$0xff]
    %v249 = vld [vmem:[#allocation8 + $0x50] sm:$0xff]
    %v250 = vld [vmem:[#allocation8 + $0x58] sm:$0xff]
    %v251 = vld [vmem:[#allocation8 + $0x60] sm:$0xff]
    %v252 = vld [vmem:[#allocation8 + $0x68] sm:$0xff]
    %v253 = vld [vmem:[#allocation8 + $0x70] sm:$0xff]
    %v254 = vld [vmem:[#allocation8 + $0x78] sm:$0xff]
    %v255 = vld [vmem:[#allocation8 + $0x80] sm:$0xff]
    %v256 = vld [vmem:[#allocation8 + $0x88] sm:$0xff]
    %v257 = vld [vmem:[#allocation8 + $0x90] sm:$0xff]
    %v258 = vld [vmem:[#allocation8 + $0x98] sm:$0xff]
    %v259 = vld [vmem:[#allocation8 + $0xa0] sm:$0xff]
    %v260 = vld [vmem:[#allocation8 + $0xa8] sm:$0xff]
    %v261 = vld [vmem:[#allocation8 + $0xb0] sm:$0xff]
    %v262 = vld [vmem:[#allocation8 + $0xb8] sm:$0xff]
    %v263 = vld [vmem:[#allocation8 + $0xc0] sm:$0xff]
    %v264 = vld [vmem:[#allocation8 + $0xc8] sm:$0xff]
    %v265 = vld [vmem:[#allocation8 + $0xd0] sm:$0xff]
    %v266 = vld [vmem:[#allocation8 + $0xd8] sm:$0xff]
    %v267 = vld [vmem:[#allocation8 + $0xe0] sm:$0xff]
    %v268 = vld [vmem:[#allocation8 + $0xe8] sm:$0xff]
    %v269 = vld [vmem:[#allocation8 + $0xf0] sm:$0xff]
    %v270 = vld [vmem:[#allocation8 + $0xf8] sm:$0xff]
    %v271 = vld [vmem:[#allocation8 + $0x100] sm:$0xff]
    %v272 = vld [vmem:[#allocation8 + $0x108] sm:$0xff]
    %v273 = vld [vmem:[#allocation8 + $0x110] sm:$0xff]
    %v274 = vld [vmem:[#allocation8 + $0x118] sm:$0xff]
    %v275 = vld [vmem:[#allocation8 + $0x120] sm:$0xff]
    %v276 = vld [vmem:[#allocation8 + $0x128] sm:$0xff]
    %v277 = vld [vmem:[#allocation8 + $0x130] sm:$0xff]
    %v278 = vld [vmem:[#allocation8 + $0x138] sm:$0xff]
    %v279 = vld [vmem:[#allocation8 + $0x140] sm:$0xff]
    %v280 = vld [vmem:[#allocation8 + $0x148] sm:$0xff]
    %v281 = vld [vmem:[#allocation8 + $0x150] sm:$0xff]
    %v282 = vld [vmem:[#allocation8 + $0x158] sm:$0xff]
    %v283 = vld [vmem:[#allocation8 + $0x160] sm:$0xff]
    %v284 = vld [vmem:[#allocation8 + $0x168] sm:$0xff]
    %v285 = vld [vmem:[#allocation8 + $0x170] sm:$0xff]
    %v286 = vld [vmem:[#allocation8 + $0x178] sm:$0xff]
    %v287 = vld [vmem:[#allocation8 + $0x180] sm:$0xff]
    %v288 = vld [vmem:[#allocation8 + $0x188] sm:$0xff]
    %v289 = vld [vmem:[#allocation8 + $0x190] sm:$0xff]
    %v290 = vld [vmem:[#allocation8 + $0x198] sm:$0xff]
    %v291 = vld [vmem:[#allocation8 + $0x1a0] sm:$0xff]
    %v292 = vld [vmem:[#allocation8 + $0x1a8] sm:$0xff]
    %v293 = vld [vmem:[#allocation8 + $0x1b0] sm:$0xff]
    %v294 = vld [vmem:[#allocation8 + $0x1b8] sm:$0xff]
    %v295 = vld [vmem:[#allocation8 + $0x1c0] sm:$0xff]
    %v296 = vld [vmem:[#allocation8 + $0x1c8] sm:$0xff]
    %v297 = vld [vmem:[#allocation8 + $0x1d0] sm:$0xff]
    %v298 = vld [vmem:[#allocation8 + $0x1d8] sm:$0xff]
    %v299 = vld [vmem:[#allocation8 + $0x1e0] sm:$0xff]
    %v300 = vld [vmem:[#allocation8 + $0x1e8] sm:$0xff]
    %v301 = vld [vmem:[#allocation8 + $0x1f0] sm:$0xff]
    %v302 = vld [vmem:[#allocation8 + $0x1f8] sm:$0xff]
    %v303 = vld [vmem:[%s4] sm:$0x3]
    %v305 = vlaneseq
    %v306 = vshrl.u32 %v305, 7
    %v307 = vsub.s32 0, %v306
    %v308 = vrot.slane %v303, %v307
    %v309 = vlaneseq
    %v310 = vshrl.u32 %v309, 7
    %v311 = vsub.s32 1, %v310
    %v312 = vrot.slane %v303, %v311
    %v379 = vunpack.c.l.b16 %v239
    %v380 = vunpack.c.h.b16 %v239
    %v381 = vunpack.c.l.b16 %v240
    %v382 = vunpack.c.h.b16 %v240
    %v383 = vunpack.c.l.b16 %v241
    %v384 = vunpack.c.h.b16 %v241
    %v385 = vunpack.c.l.b16 %v242
    %v386 = vunpack.c.h.b16 %v242
    %v387 = vunpack.c.l.b16 %v243
    %v388 = vunpack.c.h.b16 %v243
    %v389 = vunpack.c.l.b16 %v244
    %v390 = vunpack.c.h.b16 %v244
    %v391 = vunpack.c.l.b16 %v245
    %v392 = vunpack.c.h.b16 %v245
    %v393 = vunpack.c.l.b16 %v246
    %v394 = vunpack.c.h.b16 %v246
    %v395 = vunpack.c.l.b16 %v247
    %v396 = vunpack.c.h.b16 %v247
    %v397 = vunpack.c.l.b16 %v248
    %v398 = vunpack.c.h.b16 %v248
    %v399 = vunpack.c.l.b16 %v249
    %v400 = vunpack.c.h.b16 %v249
    %v401 = vunpack.c.l.b16 %v250
    %v402 = vunpack.c.h.b16 %v250
    %v403 = vunpack.c.l.b16 %v251
    %v404 = vunpack.c.h.b16 %v251
    %v405 = vunpack.c.l.b16 %v252
    %v406 = vunpack.c.h.b16 %v252
    %v407 = vunpack.c.l.b16 %v253
    %v408 = vunpack.c.h.b16 %v253
    %v409 = vunpack.c.l.b16 %v254
    %v410 = vunpack.c.h.b16 %v254
    %v411 = vunpack.c.l.b16 %v255
    %v412 = vunpack.c.h.b16 %v255
    %v413 = vunpack.c.l.b16 %v256
    %v414 = vunpack.c.h.b16 %v256
    %v415 = vunpack.c.l.b16 %v257
    %v416 = vunpack.c.h.b16 %v257
    %v417 = vunpack.c.l.b16 %v258
    %v418 = vunpack.c.h.b16 %v258
    %v419 = vunpack.c.l.b16 %v259
    %v420 = vunpack.c.h.b16 %v259
    %v421 = vunpack.c.l.b16 %v260
    %v422 = vunpack.c.h.b16 %v260
    %v423 = vunpack.c.l.b16 %v261
    %v424 = vunpack.c.h.b16 %v261
    %v425 = vunpack.c.l.b16 %v262
    %v426 = vunpack.c.h.b16 %v262
    %v427 = vunpack.c.l.b16 %v263
    %v428 = vunpack.c.h.b16 %v263
    %v429 = vunpack.c.l.b16 %v264
    %v430 = vunpack.c.h.b16 %v264
    %v431 = vunpack.c.l.b16 %v265
    %v432 = vunpack.c.h.b16 %v265
    %v433 = vunpack.c.l.b16 %v266
    %v434 = vunpack.c.h.b16 %v266
    %v435 = vunpack.c.l.b16 %v267
    %v436 = vunpack.c.h.b16 %v267
    %v437 = vunpack.c.l.b16 %v268
    %v438 = vunpack.c.h.b16 %v268
    %v439 = vunpack.c.l.b16 %v269
    %v440 = vunpack.c.h.b16 %v269
    %v441 = vunpack.c.l.b16 %v270
    %v442 = vunpack.c.h.b16 %v270
    %v443 = vunpack.c.l.b16 %v271
    %v444 = vunpack.c.h.b16 %v271
    %v445 = vunpack.c.l.b16 %v272
    %v446 = vunpack.c.h.b16 %v272
    %v447 = vunpack.c.l.b16 %v273
    %v448 = vunpack.c.h.b16 %v273
    %v449 = vunpack.c.l.b16 %v274
    %v450 = vunpack.c.h.b16 %v274
    %v451 = vunpack.c.l.b16 %v275
    %v452 = vunpack.c.h.b16 %v275
    %v453 = vunpack.c.l.b16 %v276
    %v454 = vunpack.c.h.b16 %v276
    %v455 = vunpack.c.l.b16 %v277
    %v456 = vunpack.c.h.b16 %v277
    %v457 = vunpack.c.l.b16 %v278
    %v458 = vunpack.c.h.b16 %v278
    %v459 = vunpack.c.l.b16 %v279
    %v460 = vunpack.c.h.b16 %v279
    %v461 = vunpack.c.l.b16 %v280
    %v462 = vunpack.c.h.b16 %v280
    %v463 = vunpack.c.l.b16 %v281
    %v464 = vunpack.c.h.b16 %v281
    %v465 = vunpack.c.l.b16 %v282
    %v466 = vunpack.c.h.b16 %v282
    %v467 = vunpack.c.l.b16 %v283
    %v468 = vunpack.c.h.b16 %v283
    %v469 = vunpack.c.l.b16 %v284
    %v470 = vunpack.c.h.b16 %v284
    %v471 = vunpack.c.l.b16 %v285
    %v472 = vunpack.c.h.b16 %v285
    %v473 = vunpack.c.l.b16 %v286
    %v474 = vunpack.c.h.b16 %v286
    %v475 = vunpack.c.l.b16 %v287
    %v476 = vunpack.c.h.b16 %v287
    %v477 = vunpack.c.l.b16 %v288
    %v478 = vunpack.c.h.b16 %v288
    %v479 = vunpack.c.l.b16 %v289
    %v480 = vunpack.c.h.b16 %v289
    %v481 = vunpack.c.l.b16 %v290
    %v482 = vunpack.c.h.b16 %v290
    %v483 = vunpack.c.l.b16 %v291
    %v484 = vunpack.c.h.b16 %v291
    %v485 = vunpack.c.l.b16 %v292
    %v486 = vunpack.c.h.b16 %v292
    %v487 = vunpack.c.l.b16 %v293
    %v488 = vunpack.c.h.b16 %v293
    %v489 = vunpack.c.l.b16 %v294
    %v490 = vunpack.c.h.b16 %v294
    %v491 = vunpack.c.l.b16 %v295
    %v492 = vunpack.c.h.b16 %v295
    %v493 = vunpack.c.l.b16 %v296
    %v494 = vunpack.c.h.b16 %v296
    %v495 = vunpack.c.l.b16 %v297
    %v496 = vunpack.c.h.b16 %v297
    %v497 = vunpack.c.l.b16 %v298
    %v498 = vunpack.c.h.b16 %v298
    %v499 = vunpack.c.l.b16 %v299
    %v500 = vunpack.c.h.b16 %v299
    %v501 = vunpack.c.l.b16 %v300
    %v502 = vunpack.c.h.b16 %v300
    %v503 = vunpack.c.l.b16 %v301
    %v504 = vunpack.c.h.b16 %v301
    %v505 = vunpack.c.l.b16 %v302
    %v506 = vunpack.c.h.b16 %v302
    %v507 = vpack.c.b16 %v381, %v379
    %v508 = vpack.c.b16 %v382, %v380
    %v509 = vpack.c.b16 %v385, %v383
    %v510 = vpack.c.b16 %v386, %v384
    %v511 = vpack.c.b16 %v389, %v387
    %v512 = vpack.c.b16 %v390, %v388
    %v513 = vpack.c.b16 %v393, %v391
    %v514 = vpack.c.b16 %v394, %v392
    %v515 = vpack.c.b16 %v397, %v395
    %v516 = vpack.c.b16 %v398, %v396
    %v517 = vpack.c.b16 %v401, %v399
    %v518 = vpack.c.b16 %v402, %v400
    %v519 = vpack.c.b16 %v405, %v403
    %v520 = vpack.c.b16 %v406, %v404
    %v521 = vpack.c.b16 %v409, %v407
    %v522 = vpack.c.b16 %v410, %v408
    %v523 = vpack.c.b16 %v413, %v411
    %v524 = vpack.c.b16 %v414, %v412
    %v525 = vpack.c.b16 %v417, %v415
    %v526 = vpack.c.b16 %v418, %v416
    %v527 = vpack.c.b16 %v421, %v419
    %v528 = vpack.c.b16 %v422, %v420
    %v529 = vpack.c.b16 %v425, %v423
    %v530 = vpack.c.b16 %v426, %v424
    %v531 = vpack.c.b16 %v429, %v427
    %v532 = vpack.c.b16 %v430, %v428
    %v533 = vpack.c.b16 %v433, %v431
    %v534 = vpack.c.b16 %v434, %v432
    %v535 = vpack.c.b16 %v437, %v435
    %v536 = vpack.c.b16 %v438, %v436
    %v537 = vpack.c.b16 %v441, %v439
    %v538 = vpack.c.b16 %v442, %v440
    %v539 = vpack.c.b16 %v445, %v443
    %v540 = vpack.c.b16 %v446, %v444
    %v541 = vpack.c.b16 %v449, %v447
    %v542 = vpack.c.b16 %v450, %v448
    %v543 = vpack.c.b16 %v453, %v451
    %v544 = vpack.c.b16 %v454, %v452
    %v545 = vpack.c.b16 %v457, %v455
    %v546 = vpack.c.b16 %v458, %v456
    %v547 = vpack.c.b16 %v461, %v459
    %v548 = vpack.c.b16 %v462, %v460
    %v549 = vpack.c.b16 %v465, %v463
    %v550 = vpack.c.b16 %v466, %v464
    %v551 = vpack.c.b16 %v469, %v467
    %v552 = vpack.c.b16 %v470, %v468
    %v553 = vpack.c.b16 %v473, %v471
    %v554 = vpack.c.b16 %v474, %v472
    %v555 = vpack.c.b16 %v477, %v475
    %v556 = vpack.c.b16 %v478, %v476
    %v557 = vpack.c.b16 %v481, %v479
    %v558 = vpack.c.b16 %v482, %v480
    %v559 = vpack.c.b16 %v485, %v483
    %v560 = vpack.c.b16 %v486, %v484
    %v561 = vpack.c.b16 %v489, %v487
    %v562 = vpack.c.b16 %v490, %v488
    %v563 = vpack.c.b16 %v493, %v491
    %v564 = vpack.c.b16 %v494, %v492
    %v565 = vpack.c.b16 %v497, %v495
    %v566 = vpack.c.b16 %v498, %v496
    %v567 = vpack.c.b16 %v501, %v499
    %v568 = vpack.c.b16 %v502, %v500
    %v569 = vpack.c.b16 %v505, %v503
    %v570 = vpack.c.b16 %v506, %v504
    %635 = vmatprep.subr.bf16.mxu0 %v508
    %636 = vmatpush1.bf16.msra.mxu0 %v507
    %637 = vmatprep.subr.bf16.mxu0 %v510
    %638 = vmatpush1.bf16.msra.mxu0 %v509
    %639 = vmatprep.subr.bf16.mxu0 %v512
    %640 = vmatpush1.bf16.msra.mxu0 %v511
    %641 = vmatprep.subr.bf16.mxu0 %v514
    %642 = vmatpush1.bf16.msra.mxu0 %v513
    %643 = vmatprep.subr.bf16.mxu0 %v516
    %644 = vmatpush1.bf16.msra.mxu0 %v515
    %645 = vmatprep.subr.bf16.mxu0 %v518
    %646 = vmatpush1.bf16.msra.mxu0 %v517
    %647 = vmatprep.subr.bf16.mxu0 %v520
    %648 = vmatpush1.bf16.msra.mxu0 %v519
    %649 = vmatprep.subr.bf16.mxu0 %v522
    %650 = vmatpush1.bf16.msra.mxu0 %v521
    %651 = vmatprep.subr.bf16.mxu0 %v524
    %652 = vmatpush1.bf16.msra.mxu0 %v523
    %653 = vmatprep.subr.bf16.mxu0 %v526
    %654 = vmatpush1.bf16.msra.mxu0 %v525
    %655 = vmatprep.subr.bf16.mxu0 %v528
    %656 = vmatpush1.bf16.msra.mxu0 %v527
    %657 = vmatprep.subr.bf16.mxu0 %v530
    %658 = vmatpush1.bf16.msra.mxu0 %v529
    %659 = vmatprep.subr.bf16.mxu0 %v532
    %660 = vmatpush1.bf16.msra.mxu0 %v531
    %661 = vmatprep.subr.bf16.mxu0 %v534
    %662 = vmatpush1.bf16.msra.mxu0 %v533
    %663 = vmatprep.subr.bf16.mxu0 %v536
    %664 = vmatpush1.bf16.msra.mxu0 %v535
    %665 = vmatprep.subr.bf16.mxu0 %v538
    %666 = vmatpush1.bf16.msra.mxu0 %v537
    %667 = vmatprep.mubr.bf16.mxu0 %v236
    %668 = vmatmul.mubr.bf16.gmra.mrb[0].mxu0 %v235
    %v669 = vpop.f32.mrb[0].mxu0
    %v670 = vadd.f32 %v308, %v669
    %v671 = vpop.f32.mrb[0].mxu0
    %v672 = vadd.f32 %v312, %v671
    %v673 = vpop.f32.mrb[0].mxu0
    %v674 = vpop.f32.mrb[0].mxu0
    %675 = vdwg.mxu0
    %676 = vmatprep.subr.bf16.mxu0 %v540
    %677 = vmatpush1.bf16.msra.mxu0 %v539
    %678 = vmatprep.subr.bf16.mxu0 %v542
    %679 = vmatpush1.bf16.msra.mxu0 %v541
    %680 = vmatprep.subr.bf16.mxu0 %v544
    %681 = vmatpush1.bf16.msra.mxu0 %v543
    %682 = vmatprep.subr.bf16.mxu0 %v546
    %683 = vmatpush1.bf16.msra.mxu0 %v545
    %684 = vmatprep.subr.bf16.mxu0 %v548
    %685 = vmatpush1.bf16.msra.mxu0 %v547
    %686 = vmatprep.subr.bf16.mxu0 %v550
    %687 = vmatpush1.bf16.msra.mxu0 %v549
    %688 = vmatprep.subr.bf16.mxu0 %v552
    %689 = vmatpush1.bf16.msra.mxu0 %v551
    %690 = vmatprep.subr.bf16.mxu0 %v554
    %691 = vmatpush1.bf16.msra.mxu0 %v553
    %692 = vmatprep.subr.bf16.mxu0 %v556
    %693 = vmatpush1.bf16.msra.mxu0 %v555
    %694 = vmatprep.subr.bf16.mxu0 %v558
    %695 = vmatpush1.bf16.msra.mxu0 %v557
    %696 = vmatprep.subr.bf16.mxu0 %v560
    %697 = vmatpush1.bf16.msra.mxu0 %v559
    %698 = vmatprep.subr.bf16.mxu0 %v562
    %699 = vmatpush1.bf16.msra.mxu0 %v561
    %700 = vmatprep.subr.bf16.mxu0 %v564
    %701 = vmatpush1.bf16.msra.mxu0 %v563
    %702 = vmatprep.subr.bf16.mxu0 %v566
    %703 = vmatpush1.bf16.msra.mxu0 %v565
    %704 = vmatprep.subr.bf16.mxu0 %v568
    %705 = vmatpush1.bf16.msra.mxu0 %v567
    %706 = vmatprep.subr.bf16.mxu0 %v570
    %707 = vmatpush1.bf16.msra.mxu0 %v569
    %708 = vmatprep.mubr.bf16.mxu0 %v238
    %709 = vmatmul.mubr.bf16.gmra.mrb[0].mxu0 %v237
    %v710 = vpop.f32.mrb[0].mxu0
    %v711 = vadd.f32 %v670, %v710
    %v712 = vpop.f32.mrb[0].mxu0
    %v713 = vadd.f32 %v672, %v712
    %v714 = vpop.f32.mrb[0].mxu0
    %v715 = vpop.f32.mrb[0].mxu0
    %716 = vdwg.mxu0
    %v717 = vmul.f32 %v711, 0.2
    %v718 = vmul.f32 %v713, 0.2
    %v719 = vmax.f32 %v711, %v717
    %v720 = vmax.f32 %v713, %v718
    %v721 = vld [vmem:[%s5] sm:$0x3]
    %v723 = vlaneseq
    %v724 = vshrl.u32 %v723, 7
    %v725 = vsub.s32 0, %v724
    %v726 = vrot.slane %v721, %v725
    %v727 = vlaneseq
    %v728 = vshrl.u32 %v727, 7
    %v729 = vsub.s32 1, %v728
    %v730 = vrot.slane %v721, %v729
    %v733 = vmul.f32 %v719, %v726
    %v734 = vmul.f32 %v720, %v730
    %v735 = vadd.f32 %v733, %v734
    %736 = vadd.xlane.f32.xlu0 %v735
    %v737 = vpop.xlane.xlu0 %736
    %v738 = vld [vmem:[#allocation2] sm:$0x1]
    %v740 = vlaneseq
    %v741 = vshrl.u32 %v740, 7
    %v742 = vsub.s32 0, %v741
    %v743 = vrot.slane %v738, %v742
    %v745 = vadd.f32 %v737, %v743
    %v746 = vsub.f32 0.0, %v745
    %v747 = vmul.f32 %v746, 1.442695
    %v748 = vpow.pop %v747
    %v749 = vadd.f32 %v748, 1.0
    %v750 = vrcp.pop %v749
    %751 = vxpose.xlu0.b32.start [1/16] %v750, 128
    %752 = vxpose.xlu0.b32.cont [2/16] 0.0, 128
    %753 = vxpose.xlu0.b32.cont [3/16] 0.0, 128
    %754 = vxpose.xlu0.b32.cont [4/16] 0.0, 128
    %755 = vxpose.xlu0.b32.cont [5/16] 0.0, 128
    %756 = vxpose.xlu0.b32.cont [6/16] 0.0, 128
    %757 = vxpose.xlu0.b32.cont [7/16] 0.0, 128
    %758 = vxpose.xlu0.b32.cont [8/16] 0.0, 128
    %759 = vxpose.xlu0.b32.cont [9/16] 0.0, 128
    %760 = vxpose.xlu0.b32.cont [10/16] 0.0, 128
    %761 = vxpose.xlu0.b32.cont [11/16] 0.0, 128
    %762 = vxpose.xlu0.b32.cont [12/16] 0.0, 128
    %763 = vxpose.xlu0.b32.cont [13/16] 0.0, 128
    %764 = vxpose.xlu0.b32.cont [14/16] 0.0, 128
    %765 = vxpose.xlu0.b32.cont [15/16] 0.0, 128
    %766 = vxpose.xlu0.b32.end [16/16] 0.0, 128
    %v767 = vpop.trf.xlu0
    %v768 = vpop.trf.xlu0
    %v769 = vpop.trf.xlu0
    %v770 = vpop.trf.xlu0
    %v771 = vpop.trf.xlu0
    %v772 = vpop.trf.xlu0
    %v773 = vpop.trf.xlu0
    %v774 = vpop.trf.xlu0
    %v775 = vpop.trf.xlu0
    %v776 = vpop.trf.xlu0
    %v777 = vpop.trf.xlu0
    %v778 = vpop.trf.xlu0
    %v779 = vpop.trf.xlu0
    %v780 = vpop.trf.xlu0
    %v781 = vpop.trf.xlu0
    %v782 = vpop.trf.xlu0
    %vm783 = vcmask 57344
    %784 = vst.msk [vmem:[#allocation9] sm:$0x1] %vm783, %v767
    // Predicated region
    $region42: #{discriminator_forward.1} parent=1 // pred_check
      _
    $region43: #{discriminator_forward.1} parent=1 // pred_check_branch
      %786 = sbr.rel (0) target = $region45
    $region44: #{discriminator_forward.1} parent=1 // pred_region
      %s788 = ssub.s32 16, 16
      %789 = vsyncadd [#allocation5], %s788
      %s791 = sshll.u32 [#allocation9], 4
      %s792 = int_to_ptr.vmem [resolvable:$true] %s791
      %794 = dma.vmem_to_hbm [thread:$0]  %s792, 16, %s7, [#allocation5]
    $region45: #{discriminator_forward.1} parent=1 // pred_fallthru
      _
    // Predicated region
    $region46: #{discriminator_forward.1} parent=1 // pred_check
      _
    $region47: #{discriminator_forward.1} parent=1 // pred_check_branch
      %796 = sbr.rel (0) target = $region49
    $region48: #{discriminator_forward.1} parent=1 // pred_region
      %797 = dma.done [#allocation5], 16
    $region49: #{discriminator_forward.1} parent=1 // pred_fallthru
      _
    %798 = vsyncpa [#allocation4], 1
    %799 = vsyncpa [#allocation7], 1
    %800 = vsyncpa [#allocation5], 1

</llo_original>
